<compile_context>
chip_gen: v5e
topology: v5e:2x2
jax: 0.10.0
libtpu: 0.0.40
codegen_flags: <defaults>
</compile_context>

<pallas_src>
import jax
import jax.numpy as jnp
from jax.experimental import pallas as pl
from jax.experimental.pallas import tpu as pltpu


def _round_up(x, m):
    return ((x + m - 1) // m) * m


def _vmem_capacity_bytes():
    """Physical VMEM per TensorCore; conservative fallback (v7x = 64 MiB)."""
    try:
        return int(pltpu.get_tpu_info().vmem_capacity_bytes)
    except Exception:
        return 64 << 20


def _choose_tile(dim, candidates, align):
    """Pick an MXU/VMEM-friendly tile size for one matmul dimension.

    Small dims get a single full-extent tile rounded up to the layout
    alignment (8 sublanes / 128 lanes).  Large dims prefer the largest
    candidate that divides evenly; otherwise the candidate with the least
    zero-padding waste.
    """
    if dim <= candidates[-1]:
        return _round_up(dim, align)
    for c in candidates:
        if dim % c == 0:
            return c
    return min(candidates, key=lambda c: _round_up(dim, c) - dim)


def _matmul_kernel_f32_out(a_ref, b_ref, o_ref):
    """f32 output: its block index is constant across k, so it stays resident
    in VMEM -- accumulate directly, skipping the scratch buffer and the
    epilogue vreg->VMEM copy."""
    @pl.when(pl.program_id(2) == 0)
    def _():
        o_ref[...] = jnp.zeros_like(o_ref)

    o_ref[...] += jnp.dot(
        a_ref[...], b_ref[...], preferred_element_type=jnp.float32
    )


def _matmul_kernel_scratch(a_ref, b_ref, o_ref, acc_ref):
    """Low-precision output: accumulate in f32 scratch, cast on last k step."""
    @pl.when(pl.program_id(2) == 0)
    def _():
        acc_ref[...] = jnp.zeros_like(acc_ref)

    acc_ref[...] += jnp.dot(
        a_ref[...], b_ref[...], preferred_element_type=jnp.float32
    )

    @pl.when(pl.program_id(2) == pl.num_programs(2) - 1)
    def _():
        o_ref[...] = acc_ref[...].astype(o_ref.dtype)


def single_op_matmul(x, w, *, tm=None, tn=None, tk=None,
                     use_bf16_inputs=False, force_pallas=False):
    """Pallas equivalent of SingleOpModel(torch.matmul, {}).forward(x, w).

    2-D x (M, K) @ w (K, N) -> (M, N).  `use_bf16_inputs=True` casts operands
    to bf16 (f32 accumulation) to hit the v6e/v7x fast MXU path when the
    caller tolerates bf16 input precision.
    """
    # TODO(synk): batched (>2-D) torch.matmul broadcasting is not handled here.
    M, K = x.shape
    K2, N = w.shape
    if K != K2:
        raise ValueError(f"inner dims must match: {K} vs {K2}")
    out_dtype = jnp.promote_types(x.dtype, w.dtype)

    # Tiny problems: one ~600-cycle grid step dwarfs the math -- let XLA do it.
    if not force_pallas and (M * N * K) < (256 ** 3):
        return jnp.dot(x, w).astype(out_dtype)

    compute_dtype = jnp.bfloat16 if use_bf16_inputs else out_dtype
    x_c = x.astype(compute_dtype)
    w_c = w.astype(compute_dtype)
    in_itemsize = jnp.dtype(compute_dtype).itemsize
    out_itemsize = jnp.dtype(out_dtype).itemsize

    # Tile selection: 256-multiples feed v6e/v7x's 2x256x256 MXU, 512/1024
    # amortizes per-grid-step overhead.  tn is always a multiple of 128 so
    # output stores are lane-dense (unmasked vst).
    tm = tm or _choose_tile(M, (512, 256, 128), 8)
    tn = tn or _choose_tile(N, (512, 256, 128), 128)
    tk = tk or _choose_tile(K, (1024, 512, 256, 128), 128)

    direct_acc = out_dtype == jnp.float32

    def working_set(tm_, tn_, tk_):
        b = 2 * tm_ * tk_ * in_itemsize      # A tile, double-buffered
        b += 2 * tk_ * tn_ * in_itemsize     # B tile, double-buffered
        b += 2 * tm_ * tn_ * out_itemsize    # output tile, double-buffered
        if not direct_acc:
            b += tm_ * tn_ * 4               # f32 accumulator scratch
        return b

    # Fit the double-buffered working set into a conservative slice of VMEM
    # (v7x has only 64 MiB per TensorCore vs 128 MiB on v5e/v6e).
    vmem_cap = _vmem_capacity_bytes()
    budget = min(vmem_cap - (16 << 20), (vmem_cap * 3) // 4)
    while working_set(tm, tn, tk) > budget and tk > 128:
        tk = max(128, _round_up(tk // 2, 128))
    while working_set(tm, tn, tk) > budget and max(tm, tn) > 128:
        if tn >= tm and tn > 128:
            tn = max(128, _round_up(tn // 2, 128))
        else:
            tm = max(8, _round_up(tm // 2, 8))

    # v7x megacore: the two TensorCores are sharded over the parallel grid
    # axes; expose >= 2 parallel grid points on mid-size problems.
    if ((M + tm - 1) // tm) * ((N + tn - 1) // tn) < 2:
        if tn % 256 == 0 and N > tn // 2:
            tn //= 2
        elif tm >= 256 and tm % 16 == 0 and M > tm // 2:
            tm //= 2

    # Zero-pad to the tile grid (zeros contribute nothing to the matmul).
    M_pad, N_pad, K_pad = _round_up(M, tm), _round_up(N, tn), _round_up(K, tk)
    if (M_pad, K_pad) != (M, K):
        x_c = jnp.pad(x_c, ((0, M_pad - M), (0, K_pad - K)))
    if (K_pad, N_pad) != (K, N):
        w_c = jnp.pad(w_c, ((0, K_pad - K), (0, N_pad - N)))

    grid = (M_pad // tm, N_pad // tn, K_pad // tk)
    kernel = _matmul_kernel_f32_out if direct_acc else _matmul_kernel_scratch
    scratch_shapes = [] if direct_acc else [pltpu.VMEM((tm, tn), jnp.float32)]

    vmem_limit = int(min(max(2 * working_set(tm, tn, tk), 32 << 20),
                         vmem_cap - (8 << 20)))

    # NOTE: if profiling shows the B-tile HBM fetch exposed at large tk, add
    # pipeline_mode=pl.Buffered(3) to the input BlockSpecs (costs extra VMEM).
    out_padded = pl.pallas_call(
        kernel,
        out_shape=jax.ShapeDtypeStruct((M_pad, N_pad), out_dtype),
        grid_spec=pltpu.PrefetchScalarGridSpec(
            num_scalar_prefetch=0,
            grid=grid,
            in_specs=[
                pl.BlockSpec((tm, tk), lambda i, j, k: (i, k)),
                pl.BlockSpec((tk, tn), lambda i, j, k: (k, j)),
            ],
            out_specs=pl.BlockSpec((tm, tn), lambda i, j, k: (i, j)),
            scratch_shapes=scratch_shapes,
        ),
        compiler_params=pltpu.CompilerParams(
            dimension_semantics=("parallel", "parallel", "arbitrary"),
            vmem_limit_bytes=vmem_limit,
        ),
    )(x_c, w_c)

    if (M_pad, N_pad) != (M, N):
        out_padded = out_padded[:M, :N]
    return out_padded


if __name__ == "__main__":
    key = jax.random.PRNGKey(0)
    kx, kw = jax.random.split(key)

    # Small shapes consistent with the generic forward: seq=8, hidden=32.
    M, K, N = 8, 32, 32
    x = jax.random.normal(kx, (M, K), dtype=jnp.float32)
    w = jax.random.normal(kw, (K, N), dtype=jnp.float32)

    # The dispatcher would route this tiny shape to jnp.dot (single grid step
    # is pure overhead); force the Pallas path here so the kernel runs.
    out = jax.block_until_ready(single_op_matmul(x, w, force_pallas=True))
    ref = jnp.dot(x, w, precision=jax.lax.Precision.HIGHEST)
    assert out.shape == (M, N)
    assert jnp.allclose(out, ref, atol=1e-4, rtol=1e-4), "mismatch (tiny, forced kernel)"

    # Small-problem fast path (pure jnp.dot) keeps torch.matmul semantics.
    out_small = jax.block_until_ready(single_op_matmul(x, w))
    assert jnp.allclose(out_small, ref, atol=1e-4, rtol=1e-4), "mismatch (bypass path)"

    # Non-tile-multiple shape: exercises zero-padding, lane-dense output tiles
    # and a multi-step k reduction through the tiled Pallas path.
    M2, K2, N2 = 200, 384, 250
    x2 = jax.random.normal(jax.random.PRNGKey(1), (M2, K2), dtype=jnp.float32)
    w2 = jax.random.normal(jax.random.PRNGKey(2), (K2, N2), dtype=jnp.float32)
    out2 = jax.block_until_ready(single_op_matmul(x2, w2, force_pallas=True))
    ref2 = jnp.dot(x2, w2, precision=jax.lax.Precision.HIGHEST)
    assert out2.shape == (M2, N2)
    assert jnp.allclose(out2, ref2, atol=1e-2, rtol=1e-3), "mismatch (padded tiled path)"

    print("KERNEL_OK")
</pallas_src>

<mosaic_0001>
module attributes {stable_mosaic.version = 11 : i64} {
  func.func @_matmul_kernel_f32_out(%arg0: i32, %arg1: i32, %arg2: i32, %arg3: memref<8x128xf32, #tpu.memory_space<vmem>>, %arg4: memref<128x128xf32, #tpu.memory_space<vmem>>, %arg5: memref<8x128xf32, #tpu.memory_space<vmem>>) attributes {dimension_semantics = [#tpu.dimension_semantics<parallel>, #tpu.dimension_semantics<parallel>, #tpu.dimension_semantics<arbitrary>], iteration_bounds = array<i64: 1, 1, 1>, scalar_prefetch = 0 : i64, scratch_operands = 0 : i64, tpu.core_type = #tpu.core_type<tc>, window_params = [{transform_indices = @transform_0, window_bounds = array<i64: 8, 128>}, {transform_indices = @transform_1, window_bounds = array<i64: 128, 128>}, {transform_indices = @transform_2, window_bounds = array<i64: 8, 128>}]} {
    %c0_i32 = arith.constant 0 : i32
    %0 = arith.cmpi eq, %arg2, %c0_i32 : i32
    %1 = arith.extui %0 : i1 to i32
    %c0_i32_0 = arith.constant 0 : i32
    %2 = arith.cmpi ne, %1, %c0_i32_0 : i32
    scf.if %2 {
      %cst_8 = arith.constant 0.000000e+00 : f32
      %9 = vector.broadcast %cst_8 : f32 to vector<8x128xf32>
      %c0_9 = arith.constant 0 : index
      %c0_10 = arith.constant 0 : index
      %10 = vector.load %arg5[%c0_9, %c0_10] : memref<8x128xf32, #tpu.memory_space<vmem>>, vector<8x128xf32>
      tpu.vector_store %arg5[%c0_9, %c0_10], %9 {strides = array<i32>} : memref<8x128xf32, #tpu.memory_space<vmem>>, vector<8x128xf32>,
    } else {
    }
    %c0 = arith.constant 0 : index
    %c0_1 = arith.constant 0 : index
    %3 = vector.load %arg5[%c0, %c0_1] : memref<8x128xf32, #tpu.memory_space<vmem>>, vector<8x128xf32>
    %c0_2 = arith.constant 0 : index
    %c0_3 = arith.constant 0 : index
    %4 = vector.load %arg3[%c0_2, %c0_3] : memref<8x128xf32, #tpu.memory_space<vmem>>, vector<8x128xf32>
    %c0_4 = arith.constant 0 : index
    %c0_5 = arith.constant 0 : index
    %5 = vector.load %arg4[%c0_4, %c0_5] : memref<128x128xf32, #tpu.memory_space<vmem>>, vector<128x128xf32>
    %cst = arith.constant dense<0.000000e+00> : vector<8x128xf32>
    %6 = tpu.matmul %4, %5, %cst {dimension_numbers = #tpu.dot_dimension_numbers<[1], [0], [0], [1], [0, 0, 1, 1], [], []>} : vector<8x128xf32>, vector<128x128xf32>, vector<8x128xf32> -> vector<8x128xf32>
    %7 = arith.addf %3, %6 : vector<8x128xf32>
    %c0_6 = arith.constant 0 : index
    %c0_7 = arith.constant 0 : index
    %8 = vector.load %arg5[%c0_6, %c0_7] : memref<8x128xf32, #tpu.memory_space<vmem>>, vector<8x128xf32>
    tpu.vector_store %arg5[%c0_6, %c0_7], %7 {strides = array<i32>} : memref<8x128xf32, #tpu.memory_space<vmem>>, vector<8x128xf32>,
    return
  }
  func.func @transform_0(%arg0: i32, %arg1: i32, %arg2: i32) -> (i32, i32) {
    %c0_i32 = arith.constant 0 : i32
    return %arg0, %arg2 : i32, i32
  }
  func.func @transform_1(%arg0: i32, %arg1: i32, %arg2: i32) -> (i32, i32) {
    %c0_i32 = arith.constant 0 : i32
    return %arg2, %arg1 : i32, i32
  }
  func.func @transform_2(%arg0: i32, %arg1: i32, %arg2: i32) -> (i32, i32) {
    %c0_i32 = arith.constant 0 : i32
    return %arg0, %arg1 : i32, i32
  }
}

</mosaic_0001>

<llo_original>
// kernel: tpu_custom_call.1
$region0: #{tpu_custom_call.1}
  #allocation0 [shape = 'u32[]', space=smem, size = 0x4, offset = 0x4, fixed_abs, tag = 'smem constant byte address 0x4 - core index']
  #allocation1 [shape = 'u32[72,128]{1,0:T(1,128)}', space=vmem, size = 0x9000, scoped, tag = 'internal scratch']
  %s0 = inlined_call_operand.hbm [shape: f32[8,128], index: 0, kind: input, shape index: {}]
  %s1 = inlined_call_operand.hbm [shape: f32[128,128], index: 1, kind: input, shape index: {}]
  %s2 = inlined_call_operand.hbm [shape: f32[8,128], index: 2, kind: output, shape index: {}]
  %s3 = sld [smem:[#allocation0]]
  $region30: #{tpu_custom_call.1} parent=0
    _
  %s5 = ssub.s32 1, %s3
  %s6 = scalar_select 0, %s5, %s3
  $region1: #{tpu_custom_call.1} parent=0
    #allocation2 [shape = 'u8[4096]{0}', space=vmem, size = 0x1000, scoped, tag = 'input window, operand 0, single buffered']
    #allocation3 [shape = 's32[1]{0}', space=sflag, size = 0x4, scoped, tag = 'scoped memory for tpu_custom_call.1']
    #allocation4 [shape = 's32[1]{0}', space=sflag, size = 0x4, scoped, tag = 'scoped memory for tpu_custom_call.1']
    #allocation5 [shape = 'u8[65536]{0}', space=vmem, size = 0x10000, scoped, tag = 'input window, operand 1, single buffered']
    #allocation6 [shape = 's32[1]{0}', space=sflag, size = 0x4, scoped, tag = 'scoped memory for tpu_custom_call.1']
    #allocation7 [shape = 'u8[4096]{0}', space=vmem, size = 0x1000, scoped, tag = 'output window, operand 0, single buffered']
    %7 = vsyncpa [#allocation3], 0
    %8 = vsyncpa [#allocation6], 0
    %9 = vsyncpa [#allocation4], 0
    // Predicated region
    $region2: #{tpu_custom_call.1} parent=1 // pred_check
      _
    $region3: #{tpu_custom_call.1} parent=1 // pred_check_branch
      %11 = sbr.rel (0) target = $region5
    $region4: #{tpu_custom_call.1} parent=1 // pred_region
      %13 = vsyncadd [#allocation3], 0
      %s15 = sshll.u32 %s0, 4
      %s16 = int_to_ptr.hbm [resolvable:$true] %s15
      %s17 = sshll.u32 [#allocation2], 4
      %s18 = int_to_ptr.vmem [resolvable:$true] %s17
      %20 = dma.hbm_to_vmem [thread:$0]  %s16, 128, %s18, [#allocation3]
    $region5: #{tpu_custom_call.1} parent=1 // pred_fallthru
      _
    // Predicated region
    $region6: #{tpu_custom_call.1} parent=1 // pred_check
      _
    $region7: #{tpu_custom_call.1} parent=1 // pred_check_branch
      %22 = sbr.rel (0) target = $region9
    $region8: #{tpu_custom_call.1} parent=1 // pred_region
      %24 = vsyncadd [#allocation6], 0
      %s25 = sshll.u32 %s1, 4
      %s26 = int_to_ptr.hbm [resolvable:$true] %s25
      %s27 = sshll.u32 [#allocation5], 4
      %s28 = int_to_ptr.vmem [resolvable:$true] %s27
      %33 = dma.hbm_to_vmem [thread:$0]  %s26, 2048, %s28, [#allocation6], 128, 128, 8
    $region9: #{tpu_custom_call.1} parent=1 // pred_fallthru
      _
    // Predicated region
    $region10: #{tpu_custom_call.1} parent=1 // pred_check
      _
    $region11: #{tpu_custom_call.1} parent=1 // pred_check_branch
      %35 = sbr.rel (0) target = $region13
    $region12: #{tpu_custom_call.1} parent=1 // pred_region
      %37 = dma.done [#allocation3], 128
    $region13: #{tpu_custom_call.1} parent=1 // pred_fallthru
      _
    // Predicated region
    $region14: #{tpu_custom_call.1} parent=1 // pred_check
      _
    $region15: #{tpu_custom_call.1} parent=1 // pred_check_branch
      %39 = sbr.rel (0) target = $region17
    $region16: #{tpu_custom_call.1} parent=1 // pred_region
      %41 = dma.done [#allocation6], 2048
    $region17: #{tpu_custom_call.1} parent=1 // pred_fallthru
      _
    %p42 = scmp.eq.s32.totalorder 0, 0
    // Predicated region
    $region18: #{tpu_custom_call.1} parent=1 // pred_check
      %p43 = pneg %p42
    $region19: #{tpu_custom_call.1} parent=1 // pred_check_branch
      %45 = sbr.rel (%p43) target = $region21
    $region20: #{tpu_custom_call.1} parent=1 // pred_region
      %46 = vst [vmem:[#allocation7] sm:$0xff] 0.0
    $region21: #{tpu_custom_call.1} parent=1 // pred_fallthru
      _
    %v47 = vld [vmem:[#allocation7] sm:$0xff]
    %v48 = vld [vmem:[#allocation2] sm:$0xff]
    %v49 = vld [vmem:[#allocation5] sm:$0xff]
    %v50 = vld [vmem:[#allocation5 + $0x8] sm:$0xff]
    %v51 = vld [vmem:[#allocation5 + $0x10] sm:$0xff]
    %v52 = vld [vmem:[#allocation5 + $0x18] sm:$0xff]
    %v53 = vld [vmem:[#allocation5 + $0x20] sm:$0xff]
    %v54 = vld [vmem:[#allocation5 + $0x28] sm:$0xff]
    %v55 = vld [vmem:[#allocation5 + $0x30] sm:$0xff]
    %v56 = vld [vmem:[#allocation5 + $0x38] sm:$0xff]
    %v57 = vld [vmem:[#allocation5 + $0x40] sm:$0xff]
    %v58 = vld [vmem:[#allocation5 + $0x48] sm:$0xff]
    %v59 = vld [vmem:[#allocation5 + $0x50] sm:$0xff]
    %v60 = vld [vmem:[#allocation5 + $0x58] sm:$0xff]
    %v61 = vld [vmem:[#allocation5 + $0x60] sm:$0xff]
    %v62 = vld [vmem:[#allocation5 + $0x68] sm:$0xff]
    %v63 = vld [vmem:[#allocation5 + $0x70] sm:$0xff]
    %v64 = vld [vmem:[#allocation5 + $0x78] sm:$0xff]
    %65 = vmatpush.msra.mxu0 %v64
    %66 = vmatpush.msra.mxu0 %v63
    %67 = vmatpush.msra.mxu0 %v62
    %68 = vmatpush.msra.mxu0 %v61
    %69 = vmatpush.msra.mxu0 %v60
    %70 = vmatpush.msra.mxu0 %v59
    %71 = vmatpush.msra.mxu0 %v58
    %72 = vmatpush.msra.mxu0 %v57
    %73 = vmatpush.msra.mxu0 %v56
    %74 = vmatpush.msra.mxu0 %v55
    %75 = vmatpush.msra.mxu0 %v54
    %76 = vmatpush.msra.mxu0 %v53
    %77 = vmatpush.msra.mxu0 %v52
    %78 = vmatpush.msra.mxu0 %v51
    %79 = vmatpush.msra.mxu0 %v50
    %80 = vmatpush.msra.mxu0 %v49
    %81 = vmatmul.f32.gmra.mxu0 %v48
    %v82 = vpop.f32.mrf.mxu0
    %v83 = vadd.f32 0.0, %v82
    %84 = vdwg.mxu0
    %v85 = vadd.f32 %v47, %v83
    %86 = vst [vmem:[#allocation7] sm:$0xff] %v85
    // Predicated region
    $region22: #{tpu_custom_call.1} parent=1 // pred_check
      _
    $region23: #{tpu_custom_call.1} parent=1 // pred_check_branch
      %88 = sbr.rel (0) target = $region25
    $region24: #{tpu_custom_call.1} parent=1 // pred_region
      %90 = vsyncadd [#allocation4], 0
      %s92 = sshll.u32 [#allocation7], 4
      %s93 = int_to_ptr.vmem [resolvable:$true] %s92
      %s94 = sshll.u32 %s2, 4
      %s95 = int_to_ptr.hbm [resolvable:$true] %s94
      %97 = dma.vmem_to_hbm [thread:$0]  %s93, 128, %s95, [#allocation4]
    $region25: #{tpu_custom_call.1} parent=1 // pred_fallthru
      _
    // Predicated region
    $region26: #{tpu_custom_call.1} parent=1 // pred_check
      _
    $region27: #{tpu_custom_call.1} parent=1 // pred_check_branch
      %99 = sbr.rel (0) target = $region29
    $region28: #{tpu_custom_call.1} parent=1 // pred_region
      %101 = dma.done [#allocation4], 128
    $region29: #{tpu_custom_call.1} parent=1 // pred_fallthru
      _
    %102 = vsyncpa [#allocation3], 1
    %103 = vsyncpa [#allocation6], 1
    %104 = vsyncpa [#allocation4], 1

</llo_original>
